<compile_context>
chip_gen: v6e
topology: v6e:2x2x1
jax: 0.10.0
libtpu: 0.0.40
codegen_flags: <defaults>
</compile_context>

<pallas_src>
import jax
import jax.numpy as jnp
from jax.experimental import pallas as pl
from jax.experimental.pallas import tpu as pltpu

INPUT_SIZE = 15
HIDDEN_DIM = 32
OUTPUT_SIZE = 9
N_LAYERS = 1


def rnn_fc_kernel(x_ref, w_ih_ref, w_hh_ref, w_fc_ref, out_ref, hidden_ref,
                  h_stack):
    # x_ref:    (T*B, I+1)  time-major rows (t*B + b), ones column appended
    # w_ih_ref: (I+1, H)    last row = b_ih + b_hh
    # w_hh_ref: (H, H)
    # w_fc_ref: (H+1, O)    last row = b_fc
    # out_ref:  (T*B, O)    time-major rows (t*B + b)
    # hidden_ref: (B, H)
    # h_stack:  VMEM scratch (T*B, H)
    TB = x_ref.shape[0]
    B, H = hidden_ref.shape
    T = TB // B

    w_hh = w_hh_ref[...]                                   # (H, H)

    # Hoisted input projection for all timesteps (bias folded into weights):
    # (T*B, I+1) @ (I+1, H) -> (T*B, H). No reshape, no relayout.
    xp = jnp.dot(x_ref[...], w_ih_ref[...],
                 preferred_element_type=jnp.float32)

    # Fully-unrolled serial recurrence; only h @ w_hh + add + tanh on the
    # critical chain. Each step's h is parked in VMEM scratch (off-chain).
    h = jnp.zeros((B, H), jnp.float32)
    for t in range(T):
        h = jnp.tanh(xp[t * B:(t + 1) * B, :]
                     + jnp.dot(h, w_hh, preferred_element_type=jnp.float32))
        h_stack[t * B:(t + 1) * B, :] = h

    hidden_ref[...] = h.astype(hidden_ref.dtype)

    # Single FC matmul + bias + single store for the whole sequence.
    fc = (jnp.dot(h_stack[...], w_fc_ref[0:H, :],
                  preferred_element_type=jnp.float32)
          + w_fc_ref[pl.ds(H, 1), :])                       # (T*B, O)
    out_ref[...] = fc.astype(out_ref.dtype)


def rnn_fc_forward(x, w_ih, w_hh, b_ih, b_hh, w_fc, b_fc):
    B, T, I = x.shape
    H = w_hh.shape[0]
    O = w_fc.shape[1]

    # Wrapper-side layout prep (free / XLA-fused, keeps the kernel relayout-free):
    #   time-major flatten + ones column -> bias folded into w_ih.
    x_tm = jnp.transpose(x, (1, 0, 2)).reshape(T * B, I)
    x_aug = jnp.concatenate(
        [x_tm, jnp.ones((T * B, 1), jnp.float32)], axis=1)          # (T*B, I+1)
    w_ih_aug = jnp.concatenate(
        [w_ih, (b_ih + b_hh).reshape(1, H)], axis=0)                 # (I+1, H)
    w_fc_aug = jnp.concatenate(
        [w_fc, b_fc.reshape(1, O)], axis=0)                          # (H+1, O)

    flops = 2 * (T * B * (I + 1) * H + T * B * H * H + T * B * H * O)
    bytes_accessed = 4 * (x_aug.size + w_ih_aug.size + w_hh.size
                          + w_fc_aug.size + T * B * O + B * H)
    vmem = pl.BlockSpec(memory_space=pltpu.MemorySpace.VMEM)

    out_tm, hidden_bh = pl.pallas_call(
        rnn_fc_kernel,
        out_shape=(
            jax.ShapeDtypeStruct((T * B, O), jnp.float32),
            jax.ShapeDtypeStruct((B, H), jnp.float32),
        ),
        in_specs=[vmem] * 4,
        out_specs=(vmem, vmem),
        scratch_shapes=[pltpu.VMEM((T * B, H), jnp.float32)],
        cost_estimate=pl.CostEstimate(
            flops=flops,
            transcendentals=T * B * H,
            bytes_accessed=bytes_accessed),
    )(x_aug, w_ih_aug, w_hh, w_fc_aug)

    # Time-major (T*B, O) -> batch-first (B*T, O); matches PyTorch's
    # out.contiguous().view(-1, hidden_dim) row order b*T + t.
    out = out_tm.reshape(T, B, O).transpose(1, 0, 2).reshape(B * T, O)
    return out, hidden_bh.reshape(N_LAYERS, B, H)


def reference_forward(x, w_ih, w_hh, b_ih, b_hh, w_fc, b_fc):
    B, T, I = x.shape
    H = w_hh.shape[0]
    h = jnp.zeros((B, H), jnp.float32)
    outs = []
    for t in range(T):
        h = jnp.tanh(x[:, t, :] @ w_ih + h @ w_hh + b_ih + b_hh)
        outs.append(h)
    out_seq = jnp.stack(outs, axis=1)                    # (B, T, H)
    fc = out_seq.reshape(B * T, H) @ w_fc + b_fc
    return fc, h.reshape(1, B, H)


if __name__ == "__main__":
    B, T = 2, 8
    key = jax.random.PRNGKey(0)
    kx, k1, k2, k3, k4, k5, k6 = jax.random.split(key, 7)

    # PyTorch-style init: U(-1/sqrt(H), 1/sqrt(H)) for RNN and Linear params.
    bound = 1.0 / (HIDDEN_DIM ** 0.5)

    x = jax.random.normal(kx, (B, T, INPUT_SIZE), jnp.float32)
    w_ih = jax.random.uniform(k1, (INPUT_SIZE, HIDDEN_DIM), jnp.float32, -bound, bound)
    w_hh = jax.random.uniform(k2, (HIDDEN_DIM, HIDDEN_DIM), jnp.float32, -bound, bound)
    b_ih = jax.random.uniform(k3, (HIDDEN_DIM,), jnp.float32, -bound, bound)
    b_hh = jax.random.uniform(k4, (HIDDEN_DIM,), jnp.float32, -bound, bound)
    w_fc = jax.random.uniform(k5, (HIDDEN_DIM, OUTPUT_SIZE), jnp.float32, -bound, bound)
    b_fc = jax.random.uniform(k6, (OUTPUT_SIZE,), jnp.float32, -bound, bound)

    out, hidden = rnn_fc_forward(x, w_ih, w_hh, b_ih, b_hh, w_fc, b_fc)
    out = jax.block_until_ready(out)
    hidden = jax.block_until_ready(hidden)

    ref_out, ref_hidden = reference_forward(x, w_ih, w_hh, b_ih, b_hh, w_fc, b_fc)
    assert out.shape == (B * T, OUTPUT_SIZE)
    assert hidden.shape == (N_LAYERS, B, HIDDEN_DIM)
    assert jnp.allclose(out, ref_out, atol=1e-5, rtol=1e-5)
    assert jnp.allclose(hidden, ref_hidden, atol=1e-5, rtol=1e-5)

    print("KERNEL_OK")
</pallas_src>

<mosaic_0001>
module attributes {stable_mosaic.version = 11 : i64} {
  func.func @rnn_fc_kernel(%arg0: memref<16x16xf32, #tpu.memory_space<vmem>>, %arg1: memref<16x32xf32, #tpu.memory_space<vmem>>, %arg2: memref<32x32xf32, #tpu.memory_space<vmem>>, %arg3: memref<33x9xf32, #tpu.memory_space<vmem>>, %arg4: memref<16x9xf32, #tpu.memory_space<vmem>>, %arg5: memref<2x32xf32, #tpu.memory_space<vmem>>, %arg6: memref<16x32xf32, #tpu.memory_space<vmem>>) attributes {dimension_semantics = [], scalar_prefetch = 0 : i64, scratch_operands = 1 : i64, tpu.core_type = #tpu.core_type<tc>} {
    %c0 = arith.constant 0 : index
    %c0_0 = arith.constant 0 : index
    %0 = vector.load %arg2[%c0, %c0_0] : memref<32x32xf32, #tpu.memory_space<vmem>>, vector<32x32xf32>
    %c0_1 = arith.constant 0 : index
    %c0_2 = arith.constant 0 : index
    %1 = vector.load %arg0[%c0_1, %c0_2] : memref<16x16xf32, #tpu.memory_space<vmem>>, vector<16x16xf32>
    %c0_3 = arith.constant 0 : index
    %c0_4 = arith.constant 0 : index
    %2 = vector.load %arg1[%c0_3, %c0_4] : memref<16x32xf32, #tpu.memory_space<vmem>>, vector<16x32xf32>
    %cst = arith.constant dense<0.000000e+00> : vector<16x32xf32>
    %3 = tpu.matmul %1, %2, %cst {dimension_numbers = #tpu.dot_dimension_numbers<[1], [0], [0], [1], [0, 0, 1, 1], [], []>} : vector<16x16xf32>, vector<16x32xf32>, vector<16x32xf32> -> vector<16x32xf32>
    %cst_5 = arith.constant 0.000000e+00 : f32
    %4 = vector.broadcast %cst_5 : f32 to vector<2x32xf32>
    %5 = vector.extract_strided_slice %3 {offsets = [0, 0], sizes = [2, 32], strides = [1, 1]} : vector<16x32xf32> to vector<2x32xf32>
    %cst_6 = arith.constant dense<0.000000e+00> : vector<2x32xf32>
    %6 = tpu.matmul %4, %0, %cst_6 {dimension_numbers = #tpu.dot_dimension_numbers<[1], [0], [0], [1], [0, 0, 1, 1], [], []>} : vector<2x32xf32>, vector<32x32xf32>, vector<2x32xf32> -> vector<2x32xf32>
    %7 = arith.addf %5, %6 : vector<2x32xf32>
    %8 = math.tanh %7 : vector<2x32xf32>
    %c0_7 = arith.constant 0 : index
    %c0_8 = arith.constant 0 : index
    %9 = vector.load %arg6[%c0_7, %c0_8] : memref<16x32xf32, #tpu.memory_space<vmem>>, vector<2x32xf32>
    tpu.vector_store %arg6[%c0_7, %c0_8], %8 {strides = array<i32>} : memref<16x32xf32, #tpu.memory_space<vmem>>, vector<2x32xf32>,
    %10 = vector.extract_strided_slice %3 {offsets = [2, 0], sizes = [2, 32], strides = [1, 1]} : vector<16x32xf32> to vector<2x32xf32>
    %cst_9 = arith.constant dense<0.000000e+00> : vector<2x32xf32>
    %11 = tpu.matmul %8, %0, %cst_9 {dimension_numbers = #tpu.dot_dimension_numbers<[1], [0], [0], [1], [0, 0, 1, 1], [], []>} : vector<2x32xf32>, vector<32x32xf32>, vector<2x32xf32> -> vector<2x32xf32>
    %12 = arith.addf %10, %11 : vector<2x32xf32>
    %13 = math.tanh %12 : vector<2x32xf32>
    %c2 = arith.constant 2 : index
    %c0_10 = arith.constant 0 : index
    %14 = vector.load %arg6[%c2, %c0_10] : memref<16x32xf32, #tpu.memory_space<vmem>>, vector<2x32xf32>
    tpu.vector_store %arg6[%c2, %c0_10], %13 {strides = array<i32>} : memref<16x32xf32, #tpu.memory_space<vmem>>, vector<2x32xf32>,
    %15 = vector.extract_strided_slice %3 {offsets = [4, 0], sizes = [2, 32], strides = [1, 1]} : vector<16x32xf32> to vector<2x32xf32>
    %cst_11 = arith.constant dense<0.000000e+00> : vector<2x32xf32>
    %16 = tpu.matmul %13, %0, %cst_11 {dimension_numbers = #tpu.dot_dimension_numbers<[1], [0], [0], [1], [0, 0, 1, 1], [], []>} : vector<2x32xf32>, vector<32x32xf32>, vector<2x32xf32> -> vector<2x32xf32>
    %17 = arith.addf %15, %16 : vector<2x32xf32>
    %18 = math.tanh %17 : vector<2x32xf32>
    %c4 = arith.constant 4 : index
    %c0_12 = arith.constant 0 : index
    %19 = vector.load %arg6[%c4, %c0_12] : memref<16x32xf32, #tpu.memory_space<vmem>>, vector<2x32xf32>
    tpu.vector_store %arg6[%c4, %c0_12], %18 {strides = array<i32>} : memref<16x32xf32, #tpu.memory_space<vmem>>, vector<2x32xf32>,
    %20 = vector.extract_strided_slice %3 {offsets = [6, 0], sizes = [2, 32], strides = [1, 1]} : vector<16x32xf32> to vector<2x32xf32>
    %cst_13 = arith.constant dense<0.000000e+00> : vector<2x32xf32>
    %21 = tpu.matmul %18, %0, %cst_13 {dimension_numbers = #tpu.dot_dimension_numbers<[1], [0], [0], [1], [0, 0, 1, 1], [], []>} : vector<2x32xf32>, vector<32x32xf32>, vector<2x32xf32> -> vector<2x32xf32>
    %22 = arith.addf %20, %21 : vector<2x32xf32>
    %23 = math.tanh %22 : vector<2x32xf32>
    %c6 = arith.constant 6 : index
    %c0_14 = arith.constant 0 : index
    %24 = vector.load %arg6[%c6, %c0_14] : memref<16x32xf32, #tpu.memory_space<vmem>>, vector<2x32xf32>
    tpu.vector_store %arg6[%c6, %c0_14], %23 {strides = array<i32>} : memref<16x32xf32, #tpu.memory_space<vmem>>, vector<2x32xf32>,
    %25 = vector.extract_strided_slice %3 {offsets = [8, 0], sizes = [2, 32], strides = [1, 1]} : vector<16x32xf32> to vector<2x32xf32>
    %cst_15 = arith.constant dense<0.000000e+00> : vector<2x32xf32>
    %26 = tpu.matmul %23, %0, %cst_15 {dimension_numbers = #tpu.dot_dimension_numbers<[1], [0], [0], [1], [0, 0, 1, 1], [], []>} : vector<2x32xf32>, vector<32x32xf32>, vector<2x32xf32> -> vector<2x32xf32>
    %27 = arith.addf %25, %26 : vector<2x32xf32>
    %28 = math.tanh %27 : vector<2x32xf32>
    %c8 = arith.constant 8 : index
    %c0_16 = arith.constant 0 : index
    %29 = vector.load %arg6[%c8, %c0_16] : memref<16x32xf32, #tpu.memory_space<vmem>>, vector<2x32xf32>
    tpu.vector_store %arg6[%c8, %c0_16], %28 {strides = array<i32>} : memref<16x32xf32, #tpu.memory_space<vmem>>, vector<2x32xf32>,
    %30 = vector.extract_strided_slice %3 {offsets = [10, 0], sizes = [2, 32], strides = [1, 1]} : vector<16x32xf32> to vector<2x32xf32>
    %cst_17 = arith.constant dense<0.000000e+00> : vector<2x32xf32>
    %31 = tpu.matmul %28, %0, %cst_17 {dimension_numbers = #tpu.dot_dimension_numbers<[1], [0], [0], [1], [0, 0, 1, 1], [], []>} : vector<2x32xf32>, vector<32x32xf32>, vector<2x32xf32> -> vector<2x32xf32>
    %32 = arith.addf %30, %31 : vector<2x32xf32>
    %33 = math.tanh %32 : vector<2x32xf32>
    %c10 = arith.constant 10 : index
    %c0_18 = arith.constant 0 : index
    %34 = vector.load %arg6[%c10, %c0_18] : memref<16x32xf32, #tpu.memory_space<vmem>>, vector<2x32xf32>
    tpu.vector_store %arg6[%c10, %c0_18], %33 {strides = array<i32>} : memref<16x32xf32, #tpu.memory_space<vmem>>, vector<2x32xf32>,
    %35 = vector.extract_strided_slice %3 {offsets = [12, 0], sizes = [2, 32], strides = [1, 1]} : vector<16x32xf32> to vector<2x32xf32>
    %cst_19 = arith.constant dense<0.000000e+00> : vector<2x32xf32>
    %36 = tpu.matmul %33, %0, %cst_19 {dimension_numbers = #tpu.dot_dimension_numbers<[1], [0], [0], [1], [0, 0, 1, 1], [], []>} : vector<2x32xf32>, vector<32x32xf32>, vector<2x32xf32> -> vector<2x32xf32>
    %37 = arith.addf %35, %36 : vector<2x32xf32>
    %38 = math.tanh %37 : vector<2x32xf32>
    %c12 = arith.constant 12 : index
    %c0_20 = arith.constant 0 : index
    %39 = vector.load %arg6[%c12, %c0_20] : memref<16x32xf32, #tpu.memory_space<vmem>>, vector<2x32xf32>
    tpu.vector_store %arg6[%c12, %c0_20], %38 {strides = array<i32>} : memref<16x32xf32, #tpu.memory_space<vmem>>, vector<2x32xf32>,
    %40 = vector.extract_strided_slice %3 {offsets = [14, 0], sizes = [2, 32], strides = [1, 1]} : vector<16x32xf32> to vector<2x32xf32>
    %cst_21 = arith.constant dense<0.000000e+00> : vector<2x32xf32>
    %41 = tpu.matmul %38, %0, %cst_21 {dimension_numbers = #tpu.dot_dimension_numbers<[1], [0], [0], [1], [0, 0, 1, 1], [], []>} : vector<2x32xf32>, vector<32x32xf32>, vector<2x32xf32> -> vector<2x32xf32>
    %42 = arith.addf %40, %41 : vector<2x32xf32>
    %43 = math.tanh %42 : vector<2x32xf32>
    %c14 = arith.constant 14 : index
    %c0_22 = arith.constant 0 : index
    %44 = vector.load %arg6[%c14, %c0_22] : memref<16x32xf32, #tpu.memory_space<vmem>>, vector<2x32xf32>
    tpu.vector_store %arg6[%c14, %c0_22], %43 {strides = array<i32>} : memref<16x32xf32, #tpu.memory_space<vmem>>, vector<2x32xf32>,
    %c0_23 = arith.constant 0 : index
    %c0_24 = arith.constant 0 : index
    %45 = vector.load %arg5[%c0_23, %c0_24] : memref<2x32xf32, #tpu.memory_space<vmem>>, vector<2x32xf32>
    tpu.vector_store %arg5[%c0_23, %c0_24], %43 {strides = array<i32>} : memref<2x32xf32, #tpu.memory_space<vmem>>, vector<2x32xf32>,
    %c0_25 = arith.constant 0 : index
    %c0_26 = arith.constant 0 : index
    %46 = vector.load %arg6[%c0_25, %c0_26] : memref<16x32xf32, #tpu.memory_space<vmem>>, vector<16x32xf32>
    %c0_27 = arith.constant 0 : index
    %c0_28 = arith.constant 0 : index
    %47 = vector.load %arg3[%c0_27, %c0_28] : memref<33x9xf32, #tpu.memory_space<vmem>>, vector<32x9xf32>
    %cst_29 = arith.constant dense<0.000000e+00> : vector<16x9xf32>
    %48 = tpu.matmul %46, %47, %cst_29 {dimension_numbers = #tpu.dot_dimension_numbers<[1], [0], [0], [1], [0, 0, 1, 1], [], []>} : vector<16x32xf32>, vector<32x9xf32>, vector<16x9xf32> -> vector<16x9xf32>
    %c32 = arith.constant 32 : index
    %c0_30 = arith.constant 0 : index
    %49 = vector.load %arg3[%c32, %c0_30] : memref<33x9xf32, #tpu.memory_space<vmem>>, vector<1x9xf32>
    %50 = vector.broadcast %49 : vector<1x9xf32> to vector<16x9xf32>
    %51 = arith.addf %48, %50 : vector<16x9xf32>
    %c0_31 = arith.constant 0 : index
    %c0_32 = arith.constant 0 : index
    %52 = vector.load %arg4[%c0_31, %c0_32] : memref<16x9xf32, #tpu.memory_space<vmem>>, vector<16x9xf32>
    tpu.vector_store %arg4[%c0_31, %c0_32], %51 {strides = array<i32>} : memref<16x9xf32, #tpu.memory_space<vmem>>, vector<16x9xf32>,
    return
  }
}

</mosaic_0001>

<llo_original>
// kernel: tpu_custom_call.1
$region0: #{tpu_custom_call.1}
  #allocation0 [shape = 'u32[]', space=smem, size = 0x4, offset = 0x4, fixed_abs, tag = 'smem constant byte address 0x4 - core index']
  #allocation1 [shape = 'u32[144,128]{1,0:T(1,128)}', space=vmem, size = 0x12000, scoped, tag = 'internal scratch']
  #allocation2 [shape = 'f32[16,32]{1,0:T(8,128)}', space=vmem, size = 0x2000, scoped, tag = 'scratch operand']
  %s0 = inlined_call_operand.vmem [shape: f32[16,16], index: 0, kind: input, shape index: {}]
  %s1 = inlined_call_operand.hbm [shape: f32[16,32], index: 1, kind: input, shape index: {}]
  %s2 = inlined_call_operand.vmem [shape: f32[32,32], index: 2, kind: input, shape index: {}]
  %s3 = inlined_call_operand.vmem [shape: f32[33,9], index: 3, kind: input, shape index: {}]
  %s4 = inlined_call_operand.hbm [shape: f32[16,9], index: 4, kind: output, shape index: {0}]
  %s5 = inlined_call_operand.hbm [shape: f32[2,32], index: 5, kind: output, shape index: {1}]
  %6 = xla_tuple %s4, %s5
  %s7 = sld [smem:[#allocation0]]
  $region38: #{tpu_custom_call.1} parent=0
    _
  %s9 = ssub.s32 1, %s7
  %s10 = scalar_select 0, %s9, %s7
  $region1: #{tpu_custom_call.1} parent=0
    #allocation3 [shape = 'u8[8192]{0}', space=vmem, size = 0x2000, scoped, tag = 'input window, operand 1, single buffered']
    #allocation4 [shape = 's32[1]{0}', space=sflag, size = 0x4, scoped, tag = 'scoped memory for tpu_custom_call.1']
    #allocation5 [shape = 's32[1]{0}', space=sflag, size = 0x4, scoped, tag = 'scoped memory for tpu_custom_call.1']
    #allocation6 [shape = 'u8[8192]{0}', space=vmem, size = 0x2000, scoped, tag = 'output window, operand 0, single buffered']
    #allocation7 [shape = 'u8[1024]{0}', space=vmem, size = 0x400, scoped, tag = 'output window, operand 1, single buffered']
    #allocation8 [shape = 's32[1]{0}', space=sflag, size = 0x4, scoped, tag = 'scoped memory for tpu_custom_call.1']
    %11 = vsyncpa [#allocation4], 0
    %12 = vsyncpa [#allocation5], 0
    %13 = vsyncpa [#allocation8], 0
    // Predicated region
    $region2: #{tpu_custom_call.1} parent=1 // pred_check
      _
    $region3: #{tpu_custom_call.1} parent=1 // pred_check_branch
      %15 = sbr.rel (0) target = $region5
    $region4: #{tpu_custom_call.1} parent=1 // pred_region
      _
    $region5: #{tpu_custom_call.1} parent=1 // pred_fallthru
      _
    // Predicated region
    $region6: #{tpu_custom_call.1} parent=1 // pred_check
      _
    $region7: #{tpu_custom_call.1} parent=1 // pred_check_branch
      %17 = sbr.rel (0) target = $region9
    $region8: #{tpu_custom_call.1} parent=1 // pred_region
      %s19 = ssub.s32 256, 256
      %20 = vsyncadd [#allocation4], %s19
      %s21 = sshll.u32 [#allocation3], 4
      %s22 = int_to_ptr.vmem [resolvable:$true] %s21
      %27 = dma.hbm_to_vmem [thread:$0]  %s1, 256, %s22, [#allocation4], 128, 128, 8
    $region9: #{tpu_custom_call.1} parent=1 // pred_fallthru
      _
    // Predicated region
    $region10: #{tpu_custom_call.1} parent=1 // pred_check
      _
    $region11: #{tpu_custom_call.1} parent=1 // pred_check_branch
      %29 = sbr.rel (0) target = $region13
    $region12: #{tpu_custom_call.1} parent=1 // pred_region
      _
    $region13: #{tpu_custom_call.1} parent=1 // pred_fallthru
      _
    // Predicated region
    $region14: #{tpu_custom_call.1} parent=1 // pred_check
      _
    $region15: #{tpu_custom_call.1} parent=1 // pred_check_branch
      %31 = sbr.rel (0) target = $region17
    $region16: #{tpu_custom_call.1} parent=1 // pred_region
      _
    $region17: #{tpu_custom_call.1} parent=1 // pred_fallthru
      _
    // Predicated region
    $region18: #{tpu_custom_call.1} parent=1 // pred_check
      _
    $region19: #{tpu_custom_call.1} parent=1 // pred_check_branch
      %33 = sbr.rel (0) target = $region21
    $region20: #{tpu_custom_call.1} parent=1 // pred_region
      %34 = dma.done [#allocation4], 256
    $region21: #{tpu_custom_call.1} parent=1 // pred_fallthru
      _
    %v35 = vld [vmem:[%s2] sm:$0xff]
    %v36 = vld [vmem:[%s2 + $0x8] sm:$0xff]
    %v37 = vld [vmem:[%s2 + $0x10] sm:$0xff]
    %v38 = vld [vmem:[%s2 + $0x18] sm:$0xff]
    %v39 = vld [vmem:[%s0] sm:$0xff]
    %v40 = vld [vmem:[%s0 + $0x8] sm:$0xff]
    %v41 = vld [vmem:[#allocation3] sm:$0xff]
    %v42 = vld [vmem:[#allocation3 + $0x8] sm:$0xff]
    %vm43 = vcmask 130048
    %v45 = vsel %vm43, %v39, 0
    %v48 = vsel %vm43, %v40, 0
    %50 = vmatprep.subr.mxu0 0.0
    %51 = vmatpush1.msra.mxu0 0.0
    %52 = vmatprep.subr.mxu0 0.0
    %53 = vmatpush1.msra.mxu0 0.0
    %54 = vmatprep.subr.mxu0 0.0
    %55 = vmatpush1.msra.mxu0 0.0
    %56 = vmatprep.subr.mxu0 0.0
    %57 = vmatpush1.msra.mxu0 0.0
    %58 = vmatprep.subr.mxu0 0.0
    %59 = vmatpush1.msra.mxu0 0.0
    %60 = vmatprep.subr.mxu0 0.0
    %61 = vmatpush1.msra.mxu0 0.0
    %62 = vmatprep.subr.mxu0 0.0
    %63 = vmatpush1.msra.mxu0 0.0
    %64 = vmatprep.subr.mxu0 0.0
    %65 = vmatpush1.msra.mxu0 0.0
    %66 = vmatprep.subr.mxu0 0.0
    %67 = vmatpush1.msra.mxu0 0.0
    %68 = vmatprep.subr.mxu0 0.0
    %69 = vmatpush1.msra.mxu0 0.0
    %70 = vmatprep.subr.mxu0 0.0
    %71 = vmatpush1.msra.mxu0 0.0
    %72 = vmatprep.subr.mxu0 0.0
    %73 = vmatpush1.msra.mxu0 0.0
    %74 = vmatprep.subr.mxu0 0.0
    %75 = vmatpush1.msra.mxu0 0.0
    %76 = vmatprep.subr.mxu0 0.0
    %77 = vmatpush1.msra.mxu0 0.0
    %78 = vmatprep.subr.mxu0 0.0
    %79 = vmatpush1.msra.mxu0 %v42
    %80 = vmatprep.subr.mxu0 0.0
    %81 = vmatpush1.msra.mxu0 %v41
    %82 = vmatprep.subr.mxu0 0.0
    %83 = vmatpush2.msra.mxu0 0.0
    %84 = vmatprep.subr.mxu0 0.0
    %85 = vmatpush2.msra.mxu0 0.0
    %86 = vmatprep.subr.mxu0 0.0
    %87 = vmatpush2.msra.mxu0 0.0
    %88 = vmatprep.subr.mxu0 0.0
    %89 = vmatpush2.msra.mxu0 0.0
    %90 = vmatprep.subr.mxu0 0.0
    %91 = vmatpush2.msra.mxu0 0.0
    %92 = vmatprep.subr.mxu0 0.0
    %93 = vmatpush2.msra.mxu0 0.0
    %94 = vmatprep.subr.mxu0 0.0
    %95 = vmatpush2.msra.mxu0 0.0
    %96 = vmatprep.subr.mxu0 0.0
    %97 = vmatpush2.msra.mxu0 0.0
    %98 = vmatprep.subr.mxu0 0.0
    %99 = vmatpush2.msra.mxu0 0.0
    %100 = vmatprep.subr.mxu0 0.0
    %101 = vmatpush2.msra.mxu0 0.0
    %102 = vmatprep.subr.mxu0 0.0
    %103 = vmatpush2.msra.mxu0 0.0
    %104 = vmatprep.subr.mxu0 0.0
    %105 = vmatpush2.msra.mxu0 0.0
    %106 = vmatprep.subr.mxu0 0.0
    %107 = vmatpush2.msra.mxu0 0.0
    %108 = vmatprep.subr.mxu0 0.0
    %109 = vmatpush2.msra.mxu0 0.0
    %110 = vmatprep.subr.mxu0 0.0
    %111 = vmatpush2.msra.mxu0 0.0
    %112 = vmatprep.subr.mxu0 0.0
    %113 = vmatpush2.msra.mxu0 0.0
    %114 = vmatprep.mubr.f32.mxu0 0.0
    %115 = vmatmul.mubr.f32.gmra.mxu0 %v45
    %v116 = vpop.f32.mrf.mxu0
    %v117 = vadd.f32 0.0, %v116
    %v118 = vpop.f32.mrf.mxu0
    %119 = vmatprep.mubr.f32.mxu0 0.0
    %120 = vmatmul.mubr.f32.gmra.mxu0 %v48
    %v121 = vpop.f32.mrf.mxu0
    %v122 = vadd.f32 0.0, %v121
    %v123 = vpop.f32.mrf.mxu0
    %124 = vdwg.mxu0
    %vm125 = vcmask 261120
    %v127 = vsel %vm125, 0.0, 0
    %129 = vmatprep.subr.mxu0 0.0
    %130 = vmatpush1.msra.mxu0 0.0
    %131 = vmatprep.subr.mxu0 0.0
    %132 = vmatpush1.msra.mxu0 0.0
    %133 = vmatprep.subr.mxu0 0.0
    %134 = vmatpush1.msra.mxu0 0.0
    %135 = vmatprep.subr.mxu0 0.0
    %136 = vmatpush1.msra.mxu0 0.0
    %137 = vmatprep.subr.mxu0 0.0
    %138 = vmatpush1.msra.mxu0 0.0
    %139 = vmatprep.subr.mxu0 0.0
    %140 = vmatpush1.msra.mxu0 0.0
    %141 = vmatprep.subr.mxu0 0.0
    %142 = vmatpush1.msra.mxu0 0.0
    %143 = vmatprep.subr.mxu0 0.0
    %144 = vmatpush1.msra.mxu0 0.0
    %145 = vmatprep.subr.mxu0 0.0
    %146 = vmatpush1.msra.mxu0 0.0
    %147 = vmatprep.subr.mxu0 0.0
    %148 = vmatpush1.msra.mxu0 0.0
    %149 = vmatprep.subr.mxu0 0.0
    %150 = vmatpush1.msra.mxu0 0.0
    %151 = vmatprep.subr.mxu0 0.0
    %152 = vmatpush1.msra.mxu0 0.0
    %153 = vmatprep.subr.mxu0 0.0
    %154 = vmatpush1.msra.mxu0 %v38
    %155 = vmatprep.subr.mxu0 0.0
    %156 = vmatpush1.msra.mxu0 %v37
    %157 = vmatprep.subr.mxu0 0.0
    %158 = vmatpush1.msra.mxu0 %v36
    %159 = vmatprep.subr.mxu0 0.0
    %160 = vmatpush1.msra.mxu0 %v35
    %161 = vmatprep.subr.mxu0 0.0
    %162 = vmatpush2.msra.mxu0 0.0
    %163 = vmatprep.subr.mxu0 0.0
    %164 = vmatpush2.msra.mxu0 0.0
    %165 = vmatprep.subr.mxu0 0.0
    %166 = vmatpush2.msra.mxu0 0.0
    %167 = vmatprep.subr.mxu0 0.0
    %168 = vmatpush2.msra.mxu0 0.0
    %169 = vmatprep.subr.mxu0 0.0
    %170 = vmatpush2.msra.mxu0 0.0
    %171 = vmatprep.subr.mxu0 0.0
    %172 = vmatpush2.msra.mxu0 0.0
    %173 = vmatprep.subr.mxu0 0.0
    %174 = vmatpush2.msra.mxu0 0.0
    %175 = vmatprep.subr.mxu0 0.0
    %176 = vmatpush2.msra.mxu0 0.0
    %177 = vmatprep.subr.mxu0 0.0
    %178 = vmatpush2.msra.mxu0 0.0
    %179 = vmatprep.subr.mxu0 0.0
    %180 = vmatpush2.msra.mxu0 0.0
    %181 = vmatprep.subr.mxu0 0.0
    %182 = vmatpush2.msra.mxu0 0.0
    %183 = vmatprep.subr.mxu0 0.0
    %184 = vmatpush2.msra.mxu0 0.0
    %185 = vmatprep.subr.mxu0 0.0
    %186 = vmatpush2.msra.mxu0 0.0
    %187 = vmatprep.subr.mxu0 0.0
    %188 = vmatpush2.msra.mxu0 0.0
    %189 = vmatprep.subr.mxu0 0.0
    %190 = vmatpush2.msra.mxu0 0.0
    %191 = vmatprep.subr.mxu0 0.0
    %192 = vmatpush2.msra.mxu0 0.0
    %193 = vmatprep.mubr.f32.mxu0 0.0
    %194 = vmatmul.mubr.f32.gmra.mxu0 %v127
    %v195 = vpop.f32.mrf.mxu0
    %v196 = vadd.f32 0.0, %v195
    %v197 = vpop.f32.mrf.mxu0
    %198 = vdwg.mxu0
    %v199 = vadd.f32 %v117, %v196
    %v200 = vtanh.pop %v199
    %vm201 = vcmask 254976
    %202 = vst.msk [vmem:[#allocation2] sm:$0x3] %vm201, %v200
    %v204 = vsel %vm125, %v200, 0
    %206 = vmatprep.subr.mxu0 0.0
    %207 = vmatpush1.msra.mxu0 0.0
    %208 = vmatprep.subr.mxu0 0.0
    %209 = vmatpush1.msra.mxu0 0.0
    %210 = vmatprep.subr.mxu0 0.0
    %211 = vmatpush1.msra.mxu0 0.0
    %212 = vmatprep.subr.mxu0 0.0
    %213 = vmatpush1.msra.mxu0 0.0
    %214 = vmatprep.subr.mxu0 0.0
    %215 = vmatpush1.msra.mxu0 0.0
    %216 = vmatprep.subr.mxu0 0.0
    %217 = vmatpush1.msra.mxu0 0.0
    %218 = vmatprep.subr.mxu0 0.0
    %219 = vmatpush1.msra.mxu0 0.0
    %220 = vmatprep.subr.mxu0 0.0
    %221 = vmatpush1.msra.mxu0 0.0
    %222 = vmatprep.subr.mxu0 0.0
    %223 = vmatpush1.msra.mxu0 0.0
    %224 = vmatprep.subr.mxu0 0.0
    %225 = vmatpush1.msra.mxu0 0.0
    %226 = vmatprep.subr.mxu0 0.0
    %227 = vmatpush1.msra.mxu0 0.0
    %228 = vmatprep.subr.mxu0 0.0
    %229 = vmatpush1.msra.mxu0 0.0
    %230 = vmatprep.subr.mxu0 0.0
    %231 = vmatpush1.msra.mxu0 %v38
    %232 = vmatprep.subr.mxu0 0.0
    %233 = vmatpush1.msra.mxu0 %v37
    %234 = vmatprep.subr.mxu0 0.0
    %235 = vmatpush1.msra.mxu0 %v36
    %236 = vmatprep.subr.mxu0 0.0
    %237 = vmatpush1.msra.mxu0 %v35
    %238 = vmatprep.subr.mxu0 0.0
    %239 = vmatpush2.msra.mxu0 0.0
    %240 = vmatprep.subr.mxu0 0.0
    %241 = vmatpush2.msra.mxu0 0.0
    %242 = vmatprep.subr.mxu0 0.0
    %243 = vmatpush2.msra.mxu0 0.0
    %244 = vmatprep.subr.mxu0 0.0
    %245 = vmatpush2.msra.mxu0 0.0
    %246 = vmatprep.subr.mxu0 0.0
    %247 = vmatpush2.msra.mxu0 0.0
    %248 = vmatprep.subr.mxu0 0.0
    %249 = vmatpush2.msra.mxu0 0.0
    %250 = vmatprep.subr.mxu0 0.0
    %251 = vmatpush2.msra.mxu0 0.0
    %252 = vmatprep.subr.mxu0 0.0
    %253 = vmatpush2.msra.mxu0 0.0
    %254 = vmatprep.subr.mxu0 0.0
    %255 = vmatpush2.msra.mxu0 0.0
    %256 = vmatprep.subr.mxu0 0.0
    %257 = vmatpush2.msra.mxu0 0.0
    %258 = vmatprep.subr.mxu0 0.0
    %259 = vmatpush2.msra.mxu0 0.0
    %260 = vmatprep.subr.mxu0 0.0
    %261 = vmatpush2.msra.mxu0 0.0
    %262 = vmatprep.subr.mxu0 0.0
    %263 = vmatpush2.msra.mxu0 0.0
    %264 = vmatprep.subr.mxu0 0.0
    %265 = vmatpush2.msra.mxu0 0.0
    %266 = vmatprep.subr.mxu0 0.0
    %267 = vmatpush2.msra.mxu0 0.0
    %268 = vmatprep.subr.mxu0 0.0
    %269 = vmatpush2.msra.mxu0 0.0
    %270 = vmatprep.mubr.f32.mxu0 0.0
    %271 = vmatmul.mubr.f32.gmra.mxu0 %v204
    %v272 = vpop.f32.mrf.mxu0
    %v273 = vadd.f32 0.0, %v272
    %v274 = vpop.f32.mrf.mxu0
    %275 = vdwg.mxu0
    %v277 = vrot.slane %v273, 6
    %v279 = vadd.f32 %v117, %v277
    %v280 = vtanh.pop %v279
    %vm281 = vcmask 257026
    %282 = vst.msk [vmem:[#allocation2] sm:$0xc] %vm281, %v280
    %v284 = vrot.slane %v280, 2
    %v285 = vsel %vm125, %v284, 0
    %287 = vmatprep.subr.mxu0 0.0
    %288 = vmatpush1.msra.mxu0 0.0
    %289 = vmatprep.subr.mxu0 0.0
    %290 = vmatpush1.msra.mxu0 0.0
    %291 = vmatprep.subr.mxu0 0.0
    %292 = vmatpush1.msra.mxu0 0.0
    %293 = vmatprep.subr.mxu0 0.0
    %294 = vmatpush1.msra.mxu0 0.0
    %295 = vmatprep.subr.mxu0 0.0
    %296 = vmatpush1.msra.mxu0 0.0
    %297 = vmatprep.subr.mxu0 0.0
    %298 = vmatpush1.msra.mxu0 0.0
    %299 = vmatprep.subr.mxu0 0.0
    %300 = vmatpush1.msra.mxu0 0.0
    %301 = vmatprep.subr.mxu0 0.0
    %302 = vmatpush1.msra.mxu0 0.0
    %303 = vmatprep.subr.mxu0 0.0
    %304 = vmatpush1.msra.mxu0 0.0
    %305 = vmatprep.subr.mxu0 0.0
    %306 = vmatpush1.msra.mxu0 0.0
    %307 = vmatprep.subr.mxu0 0.0
    %308 = vmatpush1.msra.mxu0 0.0
    %309 = vmatprep.subr.mxu0 0.0
    %310 = vmatpush1.msra.mxu0 0.0
    %311 = vmatprep.subr.mxu0 0.0
    %312 = vmatpush1.msra.mxu0 %v38
    %313 = vmatprep.subr.mxu0 0.0
    %314 = vmatpush1.msra.mxu0 %v37
    %315 = vmatprep.subr.mxu0 0.0
    %316 = vmatpush1.msra.mxu0 %v36
    %317 = vmatprep.subr.mxu0 0.0
    %318 = vmatpush1.msra.mxu0 %v35
    %319 = vmatprep.subr.mxu0 0.0
    %320 = vmatpush2.msra.mxu0 0.0
    %321 = vmatprep.subr.mxu0 0.0
    %322 = vmatpush2.msra.mxu0 0.0
    %323 = vmatprep.subr.mxu0 0.0
    %324 = vmatpush2.msra.mxu0 0.0
    %325 = vmatprep.subr.mxu0 0.0
    %326 = vmatpush2.msra.mxu0 0.0
    %327 = vmatprep.subr.mxu0 0.0
    %328 = vmatpush2.msra.mxu0 0.0
    %329 = vmatprep.subr.mxu0 0.0
    %330 = vmatpush2.msra.mxu0 0.0
    %331 = vmatprep.subr.mxu0 0.0
    %332 = vmatpush2.msra.mxu0 0.0
    %333 = vmatprep.subr.mxu0 0.0
    %334 = vmatpush2.msra.mxu0 0.0
    %335 = vmatprep.subr.mxu0 0.0
    %336 = vmatpush2.msra.mxu0 0.0
    %337 = vmatprep.subr.mxu0 0.0
    %338 = vmatpush2.msra.mxu0 0.0
    %339 = vmatprep.subr.mxu0 0.0
    %340 = vmatpush2.msra.mxu0 0.0
    %341 = vmatprep.subr.mxu0 0.0
    %342 = vmatpush2.msra.mxu0 0.0
    %343 = vmatprep.subr.mxu0 0.0
    %344 = vmatpush2.msra.mxu0 0.0
    %345 = vmatprep.subr.mxu0 0.0
    %346 = vmatpush2.msra.mxu0 0.0
    %347 = vmatprep.subr.mxu0 0.0
    %348 = vmatpush2.msra.mxu0 0.0
    %349 = vmatprep.subr.mxu0 0.0
    %350 = vmatpush2.msra.mxu0 0.0
    %351 = vmatprep.mubr.f32.mxu0 0.0
    %352 = vmatmul.mubr.f32.gmra.mxu0 %v285
    %v353 = vpop.f32.mrf.mxu0
    %v354 = vadd.f32 0.0, %v353
    %v355 = vpop.f32.mrf.mxu0
    %356 = vdwg.mxu0
    %v358 = vrot.slane %v354, 4
    %v360 = vadd.f32 %v117, %v358
    %v361 = vtanh.pop %v360
    %vm362 = vcmask 259076
    %363 = vst.msk [vmem:[#allocation2] sm:$0x30] %vm362, %v361
    %v365 = vrot.slane %v361, 4
    %v366 = vsel %vm125, %v365, 0
    %368 = vmatprep.subr.mxu0 0.0
    %369 = vmatpush1.msra.mxu0 0.0
    %370 = vmatprep.subr.mxu0 0.0
    %371 = vmatpush1.msra.mxu0 0.0
    %372 = vmatprep.subr.mxu0 0.0
    %373 = vmatpush1.msra.mxu0 0.0
    %374 = vmatprep.subr.mxu0 0.0
    %375 = vmatpush1.msra.mxu0 0.0
    %376 = vmatprep.subr.mxu0 0.0
    %377 = vmatpush1.msra.mxu0 0.0
    %378 = vmatprep.subr.mxu0 0.0
    %379 = vmatpush1.msra.mxu0 0.0
    %380 = vmatprep.subr.mxu0 0.0
    %381 = vmatpush1.msra.mxu0 0.0
    %382 = vmatprep.subr.mxu0 0.0
    %383 = vmatpush1.msra.mxu0 0.0
    %384 = vmatprep.subr.mxu0 0.0
    %385 = vmatpush1.msra.mxu0 0.0
    %386 = vmatprep.subr.mxu0 0.0
    %387 = vmatpush1.msra.mxu0 0.0
    %388 = vmatprep.subr.mxu0 0.0
    %389 = vmatpush1.msra.mxu0 0.0
    %390 = vmatprep.subr.mxu0 0.0
    %391 = vmatpush1.msra.mxu0 0.0
    %392 = vmatprep.subr.mxu0 0.0
    %393 = vmatpush1.msra.mxu0 %v38
    %394 = vmatprep.subr.mxu0 0.0
    %395 = vmatpush1.msra.mxu0 %v37
    %396 = vmatprep.subr.mxu0 0.0
    %397 = vmatpush1.msra.mxu0 %v36
    %398 = vmatprep.subr.mxu0 0.0
    %399 = vmatpush1.msra.mxu0 %v35
    %400 = vmatprep.subr.mxu0 0.0
    %401 = vmatpush2.msra.mxu0 0.0
    %402 = vmatprep.subr.mxu0 0.0
    %403 = vmatpush2.msra.mxu0 0.0
    %404 = vmatprep.subr.mxu0 0.0
    %405 = vmatpush2.msra.mxu0 0.0
    %406 = vmatprep.subr.mxu0 0.0
    %407 = vmatpush2.msra.mxu0 0.0
    %408 = vmatprep.subr.mxu0 0.0
    %409 = vmatpush2.msra.mxu0 0.0
    %410 = vmatprep.subr.mxu0 0.0
    %411 = vmatpush2.msra.mxu0 0.0
    %412 = vmatprep.subr.mxu0 0.0
    %413 = vmatpush2.msra.mxu0 0.0
    %414 = vmatprep.subr.mxu0 0.0
    %415 = vmatpush2.msra.mxu0 0.0
    %416 = vmatprep.subr.mxu0 0.0
    %417 = vmatpush2.msra.mxu0 0.0
    %418 = vmatprep.subr.mxu0 0.0
    %419 = vmatpush2.msra.mxu0 0.0
    %420 = vmatprep.subr.mxu0 0.0
    %421 = vmatpush2.msra.mxu0 0.0
    %422 = vmatprep.subr.mxu0 0.0
    %423 = vmatpush2.msra.mxu0 0.0
    %424 = vmatprep.subr.mxu0 0.0
    %425 = vmatpush2.msra.mxu0 0.0
    %426 = vmatprep.subr.mxu0 0.0
    %427 = vmatpush2.msra.mxu0 0.0
    %428 = vmatprep.subr.mxu0 0.0
    %429 = vmatpush2.msra.mxu0 0.0
    %430 = vmatprep.subr.mxu0 0.0
    %431 = vmatpush2.msra.mxu0 0.0
    %432 = vmatprep.mubr.f32.mxu0 0.0
    %433 = vmatmul.mubr.f32.gmra.mxu0 %v366
    %v434 = vpop.f32.mrf.mxu0
    %v435 = vadd.f32 0.0, %v434
    %v436 = vpop.f32.mrf.mxu0
    %437 = vdwg.mxu0
    %v439 = vrot.slane %v435, 2
    %v441 = vadd.f32 %v117, %v439
    %v442 = vtanh.pop %v441
    %vm443 = vcmask 261126
    %444 = vst.msk [vmem:[#allocation2] sm:$0xc0] %vm443, %v442
    %v446 = vrot.slane %v442, 6
    %v447 = vsel %vm125, %v446, 0
    %449 = vmatprep.subr.mxu0 0.0
    %450 = vmatpush1.msra.mxu0 0.0
    %451 = vmatprep.subr.mxu0 0.0
    %452 = vmatpush1.msra.mxu0 0.0
    %453 = vmatprep.subr.mxu0 0.0
    %454 = vmatpush1.msra.mxu0 0.0
    %455 = vmatprep.subr.mxu0 0.0
    %456 = vmatpush1.msra.mxu0 0.0
    %457 = vmatprep.subr.mxu0 0.0
    %458 = vmatpush1.msra.mxu0 0.0
    %459 = vmatprep.subr.mxu0 0.0
    %460 = vmatpush1.msra.mxu0 0.0
    %461 = vmatprep.subr.mxu0 0.0
    %462 = vmatpush1.msra.mxu0 0.0
    %463 = vmatprep.subr.mxu0 0.0
    %464 = vmatpush1.msra.mxu0 0.0
    %465 = vmatprep.subr.mxu0 0.0
    %466 = vmatpush1.msra.mxu0 0.0
    %467 = vmatprep.subr.mxu0 0.0
    %468 = vmatpush1.msra.mxu0 0.0
    %469 = vmatprep.subr.mxu0 0.0
    %470 = vmatpush1.msra.mxu0 0.0
    %471 = vmatprep.subr.mxu0 0.0
    %472 = vmatpush1.msra.mxu0 0.0
    %473 = vmatprep.subr.mxu0 0.0
    %474 = vmatpush1.msra.mxu0 %v38
    %475 = vmatprep.subr.mxu0 0.0
    %476 = vmatpush1.msra.mxu0 %v37
    %477 = vmatprep.subr.mxu0 0.0
    %478 = vmatpush1.msra.mxu0 %v36
    %479 = vmatprep.subr.mxu0 0.0
    %480 = vmatpush1.msra.mxu0 %v35
    %481 = vmatprep.subr.mxu0 0.0
    %482 = vmatpush2.msra.mxu0 0.0
    %483 = vmatprep.subr.mxu0 0.0
    %484 = vmatpush2.msra.mxu0 0.0
    %485 = vmatprep.subr.mxu0 0.0
    %486 = vmatpush2.msra.mxu0 0.0
    %487 = vmatprep.subr.mxu0 0.0
    %488 = vmatpush2.msra.mxu0 0.0
    %489 = vmatprep.subr.mxu0 0.0
    %490 = vmatpush2.msra.mxu0 0.0
    %491 = vmatprep.subr.mxu0 0.0
    %492 = vmatpush2.msra.mxu0 0.0
    %493 = vmatprep.subr.mxu0 0.0
    %494 = vmatpush2.msra.mxu0 0.0
    %495 = vmatprep.subr.mxu0 0.0
    %496 = vmatpush2.msra.mxu0 0.0
    %497 = vmatprep.subr.mxu0 0.0
    %498 = vmatpush2.msra.mxu0 0.0
    %499 = vmatprep.subr.mxu0 0.0
    %500 = vmatpush2.msra.mxu0 0.0
    %501 = vmatprep.subr.mxu0 0.0
    %502 = vmatpush2.msra.mxu0 0.0
    %503 = vmatprep.subr.mxu0 0.0
    %504 = vmatpush2.msra.mxu0 0.0
    %505 = vmatprep.subr.mxu0 0.0
    %506 = vmatpush2.msra.mxu0 0.0
    %507 = vmatprep.subr.mxu0 0.0
    %508 = vmatpush2.msra.mxu0 0.0
    %509 = vmatprep.subr.mxu0 0.0
    %510 = vmatpush2.msra.mxu0 0.0
    %511 = vmatprep.subr.mxu0 0.0
    %512 = vmatpush2.msra.mxu0 0.0
    %513 = vmatprep.mubr.f32.mxu0 0.0
    %514 = vmatmul.mubr.f32.gmra.mxu0 %v447
    %v515 = vpop.f32.mrf.mxu0
    %v516 = vadd.f32 0.0, %v515
    %v517 = vpop.f32.mrf.mxu0
    %518 = vdwg.mxu0
    %v519 = vadd.f32 %v122, %v516
    %v520 = vtanh.pop %v519
    %521 = vst.msk [vmem:[#allocation2 + $0x8] sm:$0x3] %vm201, %v520
    %v523 = vsel %vm125, %v520, 0
    %525 = vmatprep.subr.mxu0 0.0
    %526 = vmatpush1.msra.mxu0 0.0
    %527 = vmatprep.subr.mxu0 0.0
    %528 = vmatpush1.msra.mxu0 0.0
    %529 = vmatprep.subr.mxu0 0.0
    %530 = vmatpush1.msra.mxu0 0.0
    %531 = vmatprep.subr.mxu0 0.0
    %532 = vmatpush1.msra.mxu0 0.0
    %533 = vmatprep.subr.mxu0 0.0
    %534 = vmatpush1.msra.mxu0 0.0
    %535 = vmatprep.subr.mxu0 0.0
    %536 = vmatpush1.msra.mxu0 0.0
    %537 = vmatprep.subr.mxu0 0.0
    %538 = vmatpush1.msra.mxu0 0.0
    %539 = vmatprep.subr.mxu0 0.0
    %540 = vmatpush1.msra.mxu0 0.0
    %541 = vmatprep.subr.mxu0 0.0
    %542 = vmatpush1.msra.mxu0 0.0
    %543 = vmatprep.subr.mxu0 0.0
    %544 = vmatpush1.msra.mxu0 0.0
    %545 = vmatprep.subr.mxu0 0.0
    %546 = vmatpush1.msra.mxu0 0.0
    %547 = vmatprep.subr.mxu0 0.0
    %548 = vmatpush1.msra.mxu0 0.0
    %549 = vmatprep.subr.mxu0 0.0
    %550 = vmatpush1.msra.mxu0 %v38
    %551 = vmatprep.subr.mxu0 0.0
    %552 = vmatpush1.msra.mxu0 %v37
    %553 = vmatprep.subr.mxu0 0.0
    %554 = vmatpush1.msra.mxu0 %v36
    %555 = vmatprep.subr.mxu0 0.0
    %556 = vmatpush1.msra.mxu0 %v35
    %557 = vmatprep.subr.mxu0 0.0
    %558 = vmatpush2.msra.mxu0 0.0
    %559 = vmatprep.subr.mxu0 0.0
    %560 = vmatpush2.msra.mxu0 0.0
    %561 = vmatprep.subr.mxu0 0.0
    %562 = vmatpush2.msra.mxu0 0.0
    %563 = vmatprep.subr.mxu0 0.0
    %564 = vmatpush2.msra.mxu0 0.0
    %565 = vmatprep.subr.mxu0 0.0
    %566 = vmatpush2.msra.mxu0 0.0
    %567 = vmatprep.subr.mxu0 0.0
    %568 = vmatpush2.msra.mxu0 0.0
    %569 = vmatprep.subr.mxu0 0.0
    %570 = vmatpush2.msra.mxu0 0.0
    %571 = vmatprep.subr.mxu0 0.0
    %572 = vmatpush2.msra.mxu0 0.0
    %573 = vmatprep.subr.mxu0 0.0
    %574 = vmatpush2.msra.mxu0 0.0
    %575 = vmatprep.subr.mxu0 0.0
    %576 = vmatpush2.msra.mxu0 0.0
    %577 = vmatprep.subr.mxu0 0.0
    %578 = vmatpush2.msra.mxu0 0.0
    %579 = vmatprep.subr.mxu0 0.0
    %580 = vmatpush2.msra.mxu0 0.0
    %581 = vmatprep.subr.mxu0 0.0
    %582 = vmatpush2.msra.mxu0 0.0
    %583 = vmatprep.subr.mxu0 0.0
    %584 = vmatpush2.msra.mxu0 0.0
    %585 = vmatprep.subr.mxu0 0.0
    %586 = vmatpush2.msra.mxu0 0.0
    %587 = vmatprep.subr.mxu0 0.0
    %588 = vmatpush2.msra.mxu0 0.0
    %589 = vmatprep.mubr.f32.mxu0 0.0
    %590 = vmatmul.mubr.f32.gmra.mxu0 %v523
    %v591 = vpop.f32.mrf.mxu0
    %v592 = vadd.f32 0.0, %v591
    %v593 = vpop.f32.mrf.mxu0
    %594 = vdwg.mxu0
    %v596 = vrot.slane %v592, 6
    %v598 = vadd.f32 %v122, %v596
    %v599 = vtanh.pop %v598
    %600 = vst.msk [vmem:[#allocation2 + $0x8] sm:$0xc] %vm281, %v599
    %v602 = vrot.slane %v599, 2
    %v603 = vsel %vm125, %v602, 0
    %605 = vmatprep.subr.mxu0 0.0
    %606 = vmatpush1.msra.mxu0 0.0
    %607 = vmatprep.subr.mxu0 0.0
    %608 = vmatpush1.msra.mxu0 0.0
    %609 = vmatprep.subr.mxu0 0.0
    %610 = vmatpush1.msra.mxu0 0.0
    %611 = vmatprep.subr.mxu0 0.0
    %612 = vmatpush1.msra.mxu0 0.0
    %613 = vmatprep.subr.mxu0 0.0
    %614 = vmatpush1.msra.mxu0 0.0
    %615 = vmatprep.subr.mxu0 0.0
    %616 = vmatpush1.msra.mxu0 0.0
    %617 = vmatprep.subr.mxu0 0.0
    %618 = vmatpush1.msra.mxu0 0.0
    %619 = vmatprep.subr.mxu0 0.0
    %620 = vmatpush1.msra.mxu0 0.0
    %621 = vmatprep.subr.mxu0 0.0
    %622 = vmatpush1.msra.mxu0 0.0
    %623 = vmatprep.subr.mxu0 0.0
    %624 = vmatpush1.msra.mxu0 0.0
    %625 = vmatprep.subr.mxu0 0.0
    %626 = vmatpush1.msra.mxu0 0.0
    %627 = vmatprep.subr.mxu0 0.0
    %628 = vmatpush1.msra.mxu0 0.0
    %629 = vmatprep.subr.mxu0 0.0
    %630 = vmatpush1.msra.mxu0 %v38
    %631 = vmatprep.subr.mxu0 0.0
    %632 = vmatpush1.msra.mxu0 %v37
    %633 = vmatprep.subr.mxu0 0.0
    %634 = vmatpush1.msra.mxu0 %v36
    %635 = vmatprep.subr.mxu0 0.0
    %636 = vmatpush1.msra.mxu0 %v35
    %637 = vmatprep.subr.mxu0 0.0
    %638 = vmatpush2.msra.mxu0 0.0
    %639 = vmatprep.subr.mxu0 0.0
    %640 = vmatpush2.msra.mxu0 0.0
    %641 = vmatprep.subr.mxu0 0.0
    %642 = vmatpush2.msra.mxu0 0.0
    %643 = vmatprep.subr.mxu0 0.0
    %644 = vmatpush2.msra.mxu0 0.0
    %645 = vmatprep.subr.mxu0 0.0
    %646 = vmatpush2.msra.mxu0 0.0
    %647 = vmatprep.subr.mxu0 0.0
    %648 = vmatpush2.msra.mxu0 0.0
    %649 = vmatprep.subr.mxu0 0.0
    %650 = vmatpush2.msra.mxu0 0.0
    %651 = vmatprep.subr.mxu0 0.0
    %652 = vmatpush2.msra.mxu0 0.0
    %653 = vmatprep.subr.mxu0 0.0
    %654 = vmatpush2.msra.mxu0 0.0
    %655 = vmatprep.subr.mxu0 0.0
    %656 = vmatpush2.msra.mxu0 0.0
    %657 = vmatprep.subr.mxu0 0.0
    %658 = vmatpush2.msra.mxu0 0.0
    %659 = vmatprep.subr.mxu0 0.0
    %660 = vmatpush2.msra.mxu0 0.0
    %661 = vmatprep.subr.mxu0 0.0
    %662 = vmatpush2.msra.mxu0 0.0
    %663 = vmatprep.subr.mxu0 0.0
    %664 = vmatpush2.msra.mxu0 0.0
    %665 = vmatprep.subr.mxu0 0.0
    %666 = vmatpush2.msra.mxu0 0.0
    %667 = vmatprep.subr.mxu0 0.0
    %668 = vmatpush2.msra.mxu0 0.0
    %669 = vmatprep.mubr.f32.mxu0 0.0
    %670 = vmatmul.mubr.f32.gmra.mxu0 %v603
    %v671 = vpop.f32.mrf.mxu0
    %v672 = vadd.f32 0.0, %v671
    %v673 = vpop.f32.mrf.mxu0
    %674 = vdwg.mxu0
    %v676 = vrot.slane %v672, 4
    %v678 = vadd.f32 %v122, %v676
    %v679 = vtanh.pop %v678
    %680 = vst.msk [vmem:[#allocation2 + $0x8] sm:$0x30] %vm362, %v679
    %v682 = vrot.slane %v679, 4
    %v683 = vsel %vm125, %v682, 0
    %685 = vmatprep.subr.mxu0 0.0
    %686 = vmatpush1.msra.mxu0 0.0
    %687 = vmatprep.subr.mxu0 0.0
    %688 = vmatpush1.msra.mxu0 0.0
    %689 = vmatprep.subr.mxu0 0.0
    %690 = vmatpush1.msra.mxu0 0.0
    %691 = vmatprep.subr.mxu0 0.0
    %692 = vmatpush1.msra.mxu0 0.0
    %693 = vmatprep.subr.mxu0 0.0
    %694 = vmatpush1.msra.mxu0 0.0
    %695 = vmatprep.subr.mxu0 0.0
    %696 = vmatpush1.msra.mxu0 0.0
    %697 = vmatprep.subr.mxu0 0.0
    %698 = vmatpush1.msra.mxu0 0.0
    %699 = vmatprep.subr.mxu0 0.0
    %700 = vmatpush1.msra.mxu0 0.0
    %701 = vmatprep.subr.mxu0 0.0
    %702 = vmatpush1.msra.mxu0 0.0
    %703 = vmatprep.subr.mxu0 0.0
    %704 = vmatpush1.msra.mxu0 0.0
    %705 = vmatprep.subr.mxu0 0.0
    %706 = vmatpush1.msra.mxu0 0.0
    %707 = vmatprep.subr.mxu0 0.0
    %708 = vmatpush1.msra.mxu0 0.0
    %709 = vmatprep.subr.mxu0 0.0
    %710 = vmatpush1.msra.mxu0 %v38
    %711 = vmatprep.subr.mxu0 0.0
    %712 = vmatpush1.msra.mxu0 %v37
    %713 = vmatprep.subr.mxu0 0.0
    %714 = vmatpush1.msra.mxu0 %v36
    %715 = vmatprep.subr.mxu0 0.0
    %716 = vmatpush1.msra.mxu0 %v35
    %717 = vmatprep.subr.mxu0 0.0
    %718 = vmatpush2.msra.mxu0 0.0
    %719 = vmatprep.subr.mxu0 0.0
    %720 = vmatpush2.msra.mxu0 0.0
    %721 = vmatprep.subr.mxu0 0.0
    %722 = vmatpush2.msra.mxu0 0.0
    %723 = vmatprep.subr.mxu0 0.0
    %724 = vmatpush2.msra.mxu0 0.0
    %725 = vmatprep.subr.mxu0 0.0
    %726 = vmatpush2.msra.mxu0 0.0
    %727 = vmatprep.subr.mxu0 0.0
    %728 = vmatpush2.msra.mxu0 0.0
    %729 = vmatprep.subr.mxu0 0.0
    %730 = vmatpush2.msra.mxu0 0.0
    %731 = vmatprep.subr.mxu0 0.0
    %732 = vmatpush2.msra.mxu0 0.0
    %733 = vmatprep.subr.mxu0 0.0
    %734 = vmatpush2.msra.mxu0 0.0
    %735 = vmatprep.subr.mxu0 0.0
    %736 = vmatpush2.msra.mxu0 0.0
    %737 = vmatprep.subr.mxu0 0.0
    %738 = vmatpush2.msra.mxu0 0.0
    %739 = vmatprep.subr.mxu0 0.0
    %740 = vmatpush2.msra.mxu0 0.0
    %741 = vmatprep.subr.mxu0 0.0
    %742 = vmatpush2.msra.mxu0 0.0
    %743 = vmatprep.subr.mxu0 0.0
    %744 = vmatpush2.msra.mxu0 0.0
    %745 = vmatprep.subr.mxu0 0.0
    %746 = vmatpush2.msra.mxu0 0.0
    %747 = vmatprep.subr.mxu0 0.0
    %748 = vmatpush2.msra.mxu0 0.0
    %749 = vmatprep.mubr.f32.mxu0 0.0
    %750 = vmatmul.mubr.f32.gmra.mxu0 %v683
    %v751 = vpop.f32.mrf.mxu0
    %v752 = vadd.f32 0.0, %v751
    %v753 = vpop.f32.mrf.mxu0
    %754 = vdwg.mxu0
    %v756 = vrot.slane %v752, 2
    %v758 = vadd.f32 %v122, %v756
    %v759 = vtanh.pop %v758
    %760 = vst.msk [vmem:[#allocation2 + $0x8] sm:$0xc0] %vm443, %v759
    %761 = vst.msk [vmem:[#allocation7 - $0x6] sm:$0xc0] %vm443, %v759
    %v762 = vld [vmem:[#allocation2] sm:$0xff]
    %v763 = vld [vmem:[#allocation2 + $0x8] sm:$0xff]
    %v764 = vld [vmem:[%s3] sm:$0xff]
    %v765 = vld [vmem:[%s3 + $0x8] sm:$0xff]
    %v766 = vld [vmem:[%s3 + $0x10] sm:$0xff]
    %v767 = vld [vmem:[%s3 + $0x18] sm:$0xff]
    %v768 = vld [vmem:[%s3 + $0x20] sm:$0x1]
    %v769 = vlaneseq
    %v770 = vshrl.u32 %v769, 7
    %v771 = vsub.s32 0, %v770
    %v772 = vrot.slane %v768, %v771
    %v774 = vsel %vm125, %v762, 0
    %v777 = vsel %vm125, %v763, 0
    %779 = vmatprep.subr.mxu0 0.0
    %780 = vmatpush1.msra.mxu0 0.0
    %781 = vmatprep.subr.mxu0 0.0
    %782 = vmatpush1.msra.mxu0 0.0
    %783 = vmatprep.subr.mxu0 0.0
    %784 = vmatpush1.msra.mxu0 0.0
    %785 = vmatprep.subr.mxu0 0.0
    %786 = vmatpush1.msra.mxu0 0.0
    %787 = vmatprep.subr.mxu0 0.0
    %788 = vmatpush1.msra.mxu0 0.0
    %789 = vmatprep.subr.mxu0 0.0
    %790 = vmatpush1.msra.mxu0 0.0
    %791 = vmatprep.subr.mxu0 0.0
    %792 = vmatpush1.msra.mxu0 0.0
    %793 = vmatprep.subr.mxu0 0.0
    %794 = vmatpush1.msra.mxu0 0.0
    %795 = vmatprep.subr.mxu0 0.0
    %796 = vmatpush1.msra.mxu0 0.0
    %797 = vmatprep.subr.mxu0 0.0
    %798 = vmatpush1.msra.mxu0 0.0
    %799 = vmatprep.subr.mxu0 0.0
    %800 = vmatpush1.msra.mxu0 0.0
    %801 = vmatprep.subr.mxu0 0.0
    %802 = vmatpush1.msra.mxu0 0.0
    %803 = vmatprep.subr.mxu0 0.0
    %804 = vmatpush1.msra.mxu0 %v767
    %805 = vmatprep.subr.mxu0 0.0
    %806 = vmatpush1.msra.mxu0 %v766
    %807 = vmatprep.subr.mxu0 0.0
    %808 = vmatpush1.msra.mxu0 %v765
    %809 = vmatprep.subr.mxu0 0.0
    %810 = vmatpush1.msra.mxu0 %v764
    %811 = vmatprep.subr.mxu0 0.0
    %812 = vmatpush2.msra.mxu0 0.0
    %813 = vmatprep.subr.mxu0 0.0
    %814 = vmatpush2.msra.mxu0 0.0
    %815 = vmatprep.subr.mxu0 0.0
    %816 = vmatpush2.msra.mxu0 0.0
    %817 = vmatprep.subr.mxu0 0.0
    %818 = vmatpush2.msra.mxu0 0.0
    %819 = vmatprep.subr.mxu0 0.0
    %820 = vmatpush2.msra.mxu0 0.0
    %821 = vmatprep.subr.mxu0 0.0
    %822 = vmatpush2.msra.mxu0 0.0
    %823 = vmatprep.subr.mxu0 0.0
    %824 = vmatpush2.msra.mxu0 0.0
    %825 = vmatprep.subr.mxu0 0.0
    %826 = vmatpush2.msra.mxu0 0.0
    %827 = vmatprep.subr.mxu0 0.0
    %828 = vmatpush2.msra.mxu0 0.0
    %829 = vmatprep.subr.mxu0 0.0
    %830 = vmatpush2.msra.mxu0 0.0
    %831 = vmatprep.subr.mxu0 0.0
    %832 = vmatpush2.msra.mxu0 0.0
    %833 = vmatprep.subr.mxu0 0.0
    %834 = vmatpush2.msra.mxu0 0.0
    %835 = vmatprep.subr.mxu0 0.0
    %836 = vmatpush2.msra.mxu0 0.0
    %837 = vmatprep.subr.mxu0 0.0
    %838 = vmatpush2.msra.mxu0 0.0
    %839 = vmatprep.subr.mxu0 0.0
    %840 = vmatpush2.msra.mxu0 0.0
    %841 = vmatprep.subr.mxu0 0.0
    %842 = vmatpush2.msra.mxu0 0.0
    %843 = vmatprep.mubr.f32.mxu0 0.0
    %844 = vmatmul.mubr.f32.gmra.mxu0 %v774
    %v845 = vpop.f32.mrf.mxu0
    %v846 = vadd.f32 %v772, %v845
    %v847 = vpop.f32.mrf.mxu0
    %848 = vmatprep.mubr.f32.mxu0 0.0
    %849 = vmatmul.mubr.f32.gmra.mxu0 %v777
    %v850 = vpop.f32.mrf.mxu0
    %v851 = vadd.f32 %v772, %v850
    %v852 = vpop.f32.mrf.mxu0
    %853 = vdwg.mxu0
    %vm854 = vcmask 72704
    %855 = vst.msk [vmem:[#allocation6] sm:$0xff] %vm854, %v846
    %856 = vst.msk [vmem:[#allocation6 + $0x8] sm:$0xff] %vm854, %v851
    // Predicated region
    $region22: #{tpu_custom_call.1} parent=1 // pred_check
      _
    $region23: #{tpu_custom_call.1} parent=1 // pred_check_branch
      %858 = sbr.rel (0) target = $region25
    $region24: #{tpu_custom_call.1} parent=1 // pred_region
      %s860 = ssub.s32 256, 256
      %861 = vsyncadd [#allocation5], %s860
      %s862 = sshll.u32 [#allocation6], 4
      %s863 = int_to_ptr.vmem [resolvable:$true] %s862
      %868 = dma.vmem_to_hbm [thread:$0]  %s863, 256, %s4, [#allocation5], 128, 128, 8
    $region25: #{tpu_custom_call.1} parent=1 // pred_fallthru
      _
    // Predicated region
    $region26: #{tpu_custom_call.1} parent=1 // pred_check
      _
    $region27: #{tpu_custom_call.1} parent=1 // pred_check_branch
      %870 = sbr.rel (0) target = $region29
    $region28: #{tpu_custom_call.1} parent=1 // pred_region
      %s872 = ssub.s32 32, 32
      %873 = vsyncadd [#allocation8], %s872
      %s875 = sshll.u32 [#allocation7], 4
      %s876 = int_to_ptr.vmem [resolvable:$true] %s875
      %878 = dma.vmem_to_hbm [thread:$0]  %s876, 32, %s5, [#allocation8]
    $region29: #{tpu_custom_call.1} parent=1 // pred_fallthru
      _
    // Predicated region
    $region30: #{tpu_custom_call.1} parent=1 // pred_check
      _
    $region31: #{tpu_custom_call.1} parent=1 // pred_check_branch
      %880 = sbr.rel (0) target = $region33
    $region32: #{tpu_custom_call.1} parent=1 // pred_region
      %881 = dma.done [#allocation5], 256
    $region33: #{tpu_custom_call.1} parent=1 // pred_fallthru
      _
    // Predicated region
    $region34: #{tpu_custom_call.1} parent=1 // pred_check
      _
    $region35: #{tpu_custom_call.1} parent=1 // pred_check_branch
      %883 = sbr.rel (0) target = $region37
    $region36: #{tpu_custom_call.1} parent=1 // pred_region
      %884 = dma.done [#allocation8], 32
    $region37: #{tpu_custom_call.1} parent=1 // pred_fallthru
      _
    %885 = vsyncpa [#allocation4], 1
    %886 = vsyncpa [#allocation5], 1
    %887 = vsyncpa [#allocation8], 1

</llo_original>
